<compile_context>
chip_gen: v5e
topology: v5e:2x2
jax: 0.10.0
libtpu: 0.0.40
codegen_flags: <defaults>
</compile_context>

<pallas_src>
import jax
import jax.numpy as jnp
from jax.experimental import pallas as pl
from jax.experimental.pallas import tpu as pltpu

EPS = 1e-5  # InstanceNorm1d default eps


def basic_block_kernel(x_ref, w_ref, b_ref, y_ref):
    # x_ref: (R, L), R = NB*C -- NB instances stacked on sublanes.
    # w_ref: (4R, 3R) packed block-diagonal weight slab
    #   rows [0:R)   conv1 taps: [kron(I,w1_k0) | kron(I,w1_k1) | kron(I,w1_k2)]
    #   rows [R:2R)  reset gate: [0 | kron(I,wrg) | 0]
    #   rows [2R:3R) conv2 taps
    #   rows [3R:4R) update gate:[kron(I,wug) | 0 | 0]
    # b_ref: (R, 5) bias slab, cols = [b1, brg, rg_bias, b2, bug]
    R, L = x_ref.shape
    x = x_ref[...]

    lane = jax.lax.broadcasted_iota(jnp.int32, (R, L), 1)
    is_first = lane == 0
    is_last = lane == L - 1

    def stack3(v):
        # [v shifted right by 1 ; v ; v shifted left by 1]  -> (3R, L)
        # Rolls are along lanes only, so instance bands never mix.
        prev = jnp.where(is_first, 0.0, pltpu.roll(v, shift=1, axis=1))
        nxt = jnp.where(is_last, 0.0, pltpu.roll(v, shift=L - 1, axis=1))
        return jnp.concatenate([prev, v, nxt], axis=0)

    def instance_norm(h):
        inv_l = 1.0 / L
        mean = jnp.sum(h, axis=1, keepdims=True) * inv_l
        var = jnp.maximum(
            jnp.sum(h * h, axis=1, keepdims=True) * inv_l - mean * mean, 0.0)
        return (h - mean) * jax.lax.rsqrt(var + EPS)

    # ---- Stage A: conv1 pre-act + ResetGate pre-act from one matmul ----
    a = jnp.dot(w_ref[0:2 * R, :], stack3(x), preferred_element_type=jnp.float32)
    conv1 = a[0:R, :] + b_ref[:, 0:1]                       # conv1 bias
    r_pre = a[R:2 * R, :] + b_ref[:, 1:2]                   # ResetGate fc bias
    r = jnp.maximum(jax.nn.sigmoid(r_pre) * x + b_ref[:, 2:3], 0.0)
    h1 = jnp.maximum(instance_norm(conv1), 0.0)

    # ---- Stage B: conv2 as one matmul ----
    conv2 = jnp.dot(w_ref[2 * R:3 * R, :], stack3(h1),
                    preferred_element_type=jnp.float32) + b_ref[:, 3:4]
    h2 = jnp.maximum(instance_norm(conv2), 0.0)

    # ---- UpdateGate + GRU-style blend ----
    z = jax.nn.sigmoid(
        jnp.dot(w_ref[3 * R:4 * R, 0:R], h2,
                preferred_element_type=jnp.float32) + b_ref[:, 4:5])
    y_ref[...] = z * h2 + (1.0 - z) * r


def choose_pack(batch, channels, max_rows=128):
    """Largest divisor nb of batch with nb*channels <= max_rows (one MXU row tile)."""
    nb = 1
    for cand in range(1, batch + 1):
        if batch % cand == 0 and cand * channels <= max_rows:
            nb = cand
    return nb


def pack_params(w1, b1, w2, b2, wug, bug, wrg, brg, rgb, nb):
    """Pack PyTorch-shaped params into block-diag weight slab + tiled bias slab."""
    C = w1.shape[0]
    assert w1.shape == (C, C, 3) and wrg.shape == (C, C), \
        "ResetGate elementwise multiply requires C_in == C_out"
    eye = jnp.eye(nb, dtype=jnp.float32)

    def blkdiag(m):                                   # (C,C) -> (nb*C, nb*C)
        return jnp.kron(eye, m.astype(jnp.float32))

    R = nb * C
    zero = jnp.zeros((R, R), jnp.float32)
    w1f = jnp.concatenate([blkdiag(w1[:, :, k]) for k in range(3)], axis=1)  # (R,3R)
    w2f = jnp.concatenate([blkdiag(w2[:, :, k]) for k in range(3)], axis=1)
    wrg_row = jnp.concatenate([zero, blkdiag(wrg), zero], axis=1)
    wug_row = jnp.concatenate([blkdiag(wug), zero, zero], axis=1)
    ws = jnp.concatenate([w1f, wrg_row, w2f, wug_row], axis=0)               # (4R,3R)
    bs = jnp.tile(jnp.stack([b1, brg, rgb, b2, bug], axis=1).astype(jnp.float32),
                  (nb, 1))                                                   # (R,5)
    return ws, bs


def basic_block_pallas(x, ws, bs, nb):
    """x: (B, C, L); each batch element is an independent N=1 BasicBlock forward."""
    B, C, L = x.shape
    R = nb * C
    assert B % nb == 0
    assert ws.shape == (4 * R, 3 * R) and bs.shape == (R, 5)
    # (B, C, L) -> (B/nb, nb*C, L) is a free, contiguous reshape (no transpose).
    xg = x.astype(jnp.float32).reshape(B // nb, R, L)
    y = pl.pallas_call(
        basic_block_kernel,
        out_shape=jax.ShapeDtypeStruct((B // nb, R, L), jnp.float32),
        grid=(B // nb,),
        in_specs=[
            pl.BlockSpec((None, R, L), lambda g: (g, 0, 0)),      # packed instances
            pl.BlockSpec((4 * R, 3 * R), lambda g: (0, 0)),       # weight slab (resident)
            pl.BlockSpec((R, 5), lambda g: (0, 0)),               # bias slab (resident)
        ],
        out_specs=pl.BlockSpec((None, R, L), lambda g: (g, 0, 0)),
        compiler_params=pltpu.CompilerParams(
            dimension_semantics=("parallel",)),
    )(xg, ws, bs)
    return y.reshape(B, C, L)


def basic_block_ref(x, p):
    """Pure-JAX reference mirroring the PyTorch forward per instance."""
    def one(xs):
        L = xs.shape[1]
        r = jax.nn.relu(jax.nn.sigmoid(p["wrg"] @ xs + p["brg"][:, None]) * xs
                        + p["rgb"][:, None])

        def conv(inp, w, b):
            xp = jnp.pad(inp, ((0, 0), (1, 1)))
            return sum(w[:, :, k] @ xp[:, k:k + L] for k in range(3)) + b[:, None]

        def inorm(h):
            m = h.mean(axis=1, keepdims=True)
            v = ((h - m) ** 2).mean(axis=1, keepdims=True)
            return (h - m) / jnp.sqrt(v + EPS)

        h1 = jax.nn.relu(inorm(conv(xs, p["w1"], p["b1"])))
        h2 = jax.nn.relu(inorm(conv(h1, p["w2"], p["b2"])))
        z = jax.nn.sigmoid(p["wug"] @ h2 + p["bug"][:, None])
        return z * h2 + (1.0 - z) * r

    return jax.vmap(one)(x)


if __name__ == "__main__":
    key = jax.random.PRNGKey(0)
    C = 8      # C_in == C_out (required by ResetGate's elementwise multiply)
    L = 128
    B = 4      # independent N=1 instances
    keys = jax.random.split(key, 10)

    def uinit(k, shape, fan_in):
        bound = 1.0 / (fan_in ** 0.5)
        return jax.random.uniform(k, shape, jnp.float32, -bound, bound)

    p = dict(
        w1=uinit(keys[0], (C, C, 3), C * 3),   # Conv1d weight (out, in, k)
        b1=uinit(keys[1], (C,), C * 3),
        w2=uinit(keys[2], (C, C, 3), C * 3),
        b2=uinit(keys[3], (C,), C * 3),
        wug=uinit(keys[4], (C, C), C),          # UpdateGate Linear
        bug=uinit(keys[5], (C,), C),
        wrg=uinit(keys[6], (C, C), C),          # ResetGate Linear
        brg=uinit(keys[7], (C,), C),
        rgb=uinit(keys[8], (C,), C),            # ResetGate.bias (zeros at init; random here)
    )
    x = jax.random.normal(keys[9], (B, C, L), jnp.float32)

    nb = choose_pack(B, C)                      # 4 instances per grid step here
    ws, bs = pack_params(p["w1"], p["b1"], p["w2"], p["b2"],
                         p["wug"], p["bug"], p["wrg"], p["brg"], p["rgb"], nb)

    y = jax.block_until_ready(basic_block_pallas(x, ws, bs, nb))
    y_ref = basic_block_ref(x, p)
    assert y.shape == (B, C, L)
    assert jnp.allclose(y, y_ref, atol=2e-4, rtol=2e-4), "mismatch vs JAX reference"
    print("KERNEL_OK")
</pallas_src>

<mosaic_0001>
module attributes {stable_mosaic.version = 11 : i64} {
  func.func @basic_block_kernel(%arg0: i32, %arg1: memref<1x32x128xf32, #tpu.memory_space<vmem>>, %arg2: memref<128x96xf32, #tpu.memory_space<vmem>>, %arg3: memref<32x5xf32, #tpu.memory_space<vmem>>, %arg4: memref<1x32x128xf32, #tpu.memory_space<vmem>>) attributes {dimension_semantics = [#tpu.dimension_semantics<parallel>], iteration_bounds = array<i64: 1>, scalar_prefetch = 0 : i64, scratch_operands = 0 : i64, tpu.core_type = #tpu.core_type<tc>, window_params = [{transform_indices = @transform_0, window_bounds = array<i64: 1, 32, 128>}, {pipeline_mode = #tpu.pipeline_mode<synchronous>, transform_indices = @transform_1, window_bounds = array<i64: 128, 96>}, {pipeline_mode = #tpu.pipeline_mode<synchronous>, transform_indices = @transform_2, window_bounds = array<i64: 32, 5>}, {transform_indices = @transform_3, window_bounds = array<i64: 1, 32, 128>}]} {
    %c0 = arith.constant 0 : index
    %c0_0 = arith.constant 0 : index
    %c0_1 = arith.constant 0 : index
    %0 = vector.load %arg1[%c0, %c0_0, %c0_1] : memref<1x32x128xf32, #tpu.memory_space<vmem>>, vector<1x32x128xf32>
    %1 = vector.shape_cast %0 : vector<1x32x128xf32> to vector<32x128xf32>
    %2 = tpu.iota {dimensions = array<i32: 1>} : vector<32x128xi32>
    %c0_i32 = arith.constant 0 : i32
    %3 = vector.broadcast %c0_i32 : i32 to vector<32x128xi32>
    %4 = arith.cmpi eq, %2, %3 : vector<32x128xi32>
    %c127_i32 = arith.constant 127 : i32
    %5 = vector.broadcast %c127_i32 : i32 to vector<32x128xi32>
    %6 = arith.cmpi eq, %2, %5 : vector<32x128xi32>
    %c0_2 = arith.constant 0 : index
    %c0_3 = arith.constant 0 : index
    %7 = vector.load %arg2[%c0_2, %c0_3] : memref<128x96xf32, #tpu.memory_space<vmem>>, vector<64x96xf32>
    %c1_i32 = arith.constant 1 : i32
    %8 = tpu.dynamic_rotate %1 by %c1_i32 dim 1 : vector<32x128xf32>, i32 -> vector<32x128xf32>
    %cst = arith.constant 0.000000e+00 : f32
    %9 = vector.broadcast %cst : f32 to vector<32x128xf32>
    %10 = arith.select %4, %9, %8 : vector<32x128xi1>, vector<32x128xf32>
    %c127_i32_4 = arith.constant 127 : i32
    %11 = tpu.dynamic_rotate %1 by %c127_i32_4 dim 1 : vector<32x128xf32>, i32 -> vector<32x128xf32>
    %cst_5 = arith.constant 0.000000e+00 : f32
    %12 = vector.broadcast %cst_5 : f32 to vector<32x128xf32>
    %13 = arith.select %6, %12, %11 : vector<32x128xi1>, vector<32x128xf32>
    %14 = tpu.concatenate %10, %1, %13 in 0 : vector<32x128xf32>, vector<32x128xf32>, vector<32x128xf32> -> vector<96x128xf32>
    %cst_6 = arith.constant dense<0.000000e+00> : vector<64x128xf32>
    %15 = tpu.matmul %7, %14, %cst_6 {dimension_numbers = #tpu.dot_dimension_numbers<[1], [0], [0], [1], [0, 0, 1, 1], [], []>} : vector<64x96xf32>, vector<96x128xf32>, vector<64x128xf32> -> vector<64x128xf32>
    %16 = vector.extract_strided_slice %15 {offsets = [0, 0], sizes = [32, 128], strides = [1, 1]} : vector<64x128xf32> to vector<32x128xf32>
    %c0_7 = arith.constant 0 : index
    %c0_8 = arith.constant 0 : index
    %17 = vector.load %arg3[%c0_7, %c0_8] : memref<32x5xf32, #tpu.memory_space<vmem>>, vector<32x1xf32>
    %18 = vector.broadcast %17 : vector<32x1xf32> to vector<32x128xf32>
    %19 = arith.addf %16, %18 : vector<32x128xf32>
    %20 = vector.extract_strided_slice %15 {offsets = [32, 0], sizes = [32, 128], strides = [1, 1]} : vector<64x128xf32> to vector<32x128xf32>
    %c0_9 = arith.constant 0 : index
    %c1 = arith.constant 1 : index
    %21 = vector.load %arg3[%c0_9, %c1] : memref<32x5xf32, #tpu.memory_space<vmem>>, vector<32x1xf32>
    %22 = vector.broadcast %21 : vector<32x1xf32> to vector<32x128xf32>
    %23 = arith.addf %20, %22 : vector<32x128xf32>
    %24 = arith.negf %23 : vector<32x128xf32>
    %25 = math.exp %24 : vector<32x128xf32>
    %cst_10 = arith.constant 1.000000e+00 : f32
    %26 = vector.broadcast %cst_10 : f32 to vector<32x128xf32>
    %27 = arith.addf %26, %25 : vector<32x128xf32>
    %28 = arith.divf %26, %27 : vector<32x128xf32>
    %29 = arith.mulf %28, %1 : vector<32x128xf32>
    %c0_11 = arith.constant 0 : index
    %c2 = arith.constant 2 : index
    %30 = vector.load %arg3[%c0_11, %c2] : memref<32x5xf32, #tpu.memory_space<vmem>>, vector<32x1xf32>
    %31 = vector.broadcast %30 : vector<32x1xf32> to vector<32x128xf32>
    %32 = arith.addf %29, %31 : vector<32x128xf32>
    %cst_12 = arith.constant 0.000000e+00 : f32
    %33 = vector.broadcast %cst_12 : f32 to vector<32x128xf32>
    %34 = arith.maximumf %32, %33 : vector<32x128xf32>
    %cst_13 = arith.constant dense<0.000000e+00> : vector<32xf32>
    %35 = vector.multi_reduction <add>, %19, %cst_13 [1] : vector<32x128xf32> to vector<32xf32>
    %36 = vector.shape_cast %35 : vector<32xf32> to vector<32x1xf32>
    %cst_14 = arith.constant 7.812500e-03 : f32
    %37 = vector.broadcast %cst_14 : f32 to vector<32x1xf32>
    %38 = arith.mulf %36, %37 : vector<32x1xf32>
    %39 = arith.mulf %19, %19 : vector<32x128xf32>
    %cst_15 = arith.constant dense<0.000000e+00> : vector<32xf32>
    %40 = vector.multi_reduction <add>, %39, %cst_15 [1] : vector<32x128xf32> to vector<32xf32>
    %41 = vector.shape_cast %40 : vector<32xf32> to vector<32x1xf32>
    %cst_16 = arith.constant 7.812500e-03 : f32
    %42 = vector.broadcast %cst_16 : f32 to vector<32x1xf32>
    %43 = arith.mulf %41, %42 : vector<32x1xf32>
    %44 = arith.mulf %38, %38 : vector<32x1xf32>
    %45 = arith.subf %43, %44 : vector<32x1xf32>
    %cst_17 = arith.constant 0.000000e+00 : f32
    %46 = vector.broadcast %cst_17 : f32 to vector<32x1xf32>
    %47 = arith.maximumf %45, %46 : vector<32x1xf32>
    %48 = vector.broadcast %38 : vector<32x1xf32> to vector<32x128xf32>
    %49 = arith.subf %19, %48 : vector<32x128xf32>
    %cst_18 = arith.constant 9.99999974E-6 : f32
    %50 = vector.broadcast %cst_18 : f32 to vector<32x1xf32>
    %51 = arith.addf %47, %50 : vector<32x1xf32>
    %52 = math.rsqrt %51 : vector<32x1xf32>
    %53 = vector.broadcast %52 : vector<32x1xf32> to vector<32x128xf32>
    %54 = arith.mulf %49, %53 : vector<32x128xf32>
    %cst_19 = arith.constant 0.000000e+00 : f32
    %55 = vector.broadcast %cst_19 : f32 to vector<32x128xf32>
    %56 = arith.maximumf %54, %55 : vector<32x128xf32>
    %c64 = arith.constant 64 : index
    %c0_20 = arith.constant 0 : index
    %57 = vector.load %arg2[%c64, %c0_20] : memref<128x96xf32, #tpu.memory_space<vmem>>, vector<32x96xf32>
    %c1_i32_21 = arith.constant 1 : i32
    %58 = tpu.dynamic_rotate %56 by %c1_i32_21 dim 1 : vector<32x128xf32>, i32 -> vector<32x128xf32>
    %cst_22 = arith.constant 0.000000e+00 : f32
    %59 = vector.broadcast %cst_22 : f32 to vector<32x128xf32>
    %60 = arith.select %4, %59, %58 : vector<32x128xi1>, vector<32x128xf32>
    %c127_i32_23 = arith.constant 127 : i32
    %61 = tpu.dynamic_rotate %56 by %c127_i32_23 dim 1 : vector<32x128xf32>, i32 -> vector<32x128xf32>
    %cst_24 = arith.constant 0.000000e+00 : f32
    %62 = vector.broadcast %cst_24 : f32 to vector<32x128xf32>
    %63 = arith.select %6, %62, %61 : vector<32x128xi1>, vector<32x128xf32>
    %64 = tpu.concatenate %60, %56, %63 in 0 : vector<32x128xf32>, vector<32x128xf32>, vector<32x128xf32> -> vector<96x128xf32>
    %cst_25 = arith.constant dense<0.000000e+00> : vector<32x128xf32>
    %65 = tpu.matmul %57, %64, %cst_25 {dimension_numbers = #tpu.dot_dimension_numbers<[1], [0], [0], [1], [0, 0, 1, 1], [], []>} : vector<32x96xf32>, vector<96x128xf32>, vector<32x128xf32> -> vector<32x128xf32>
    %c0_26 = arith.constant 0 : index
    %c3 = arith.constant 3 : index
    %66 = vector.load %arg3[%c0_26, %c3] : memref<32x5xf32, #tpu.memory_space<vmem>>, vector<32x1xf32>
    %67 = vector.broadcast %66 : vector<32x1xf32> to vector<32x128xf32>
    %68 = arith.addf %65, %67 : vector<32x128xf32>
    %cst_27 = arith.constant dense<0.000000e+00> : vector<32xf32>
    %69 = vector.multi_reduction <add>, %68, %cst_27 [1] : vector<32x128xf32> to vector<32xf32>
    %70 = vector.shape_cast %69 : vector<32xf32> to vector<32x1xf32>
    %cst_28 = arith.constant 7.812500e-03 : f32
    %71 = vector.broadcast %cst_28 : f32 to vector<32x1xf32>
    %72 = arith.mulf %70, %71 : vector<32x1xf32>
    %73 = arith.mulf %68, %68 : vector<32x128xf32>
    %cst_29 = arith.constant dense<0.000000e+00> : vector<32xf32>
    %74 = vector.multi_reduction <add>, %73, %cst_29 [1] : vector<32x128xf32> to vector<32xf32>
    %75 = vector.shape_cast %74 : vector<32xf32> to vector<32x1xf32>
    %cst_30 = arith.constant 7.812500e-03 : f32
    %76 = vector.broadcast %cst_30 : f32 to vector<32x1xf32>
    %77 = arith.mulf %75, %76 : vector<32x1xf32>
    %78 = arith.mulf %72, %72 : vector<32x1xf32>
    %79 = arith.subf %77, %78 : vector<32x1xf32>
    %cst_31 = arith.constant 0.000000e+00 : f32
    %80 = vector.broadcast %cst_31 : f32 to vector<32x1xf32>
    %81 = arith.maximumf %79, %80 : vector<32x1xf32>
    %82 = vector.broadcast %72 : vector<32x1xf32> to vector<32x128xf32>
    %83 = arith.subf %68, %82 : vector<32x128xf32>
    %cst_32 = arith.constant 9.99999974E-6 : f32
    %84 = vector.broadcast %cst_32 : f32 to vector<32x1xf32>
    %85 = arith.addf %81, %84 : vector<32x1xf32>
    %86 = math.rsqrt %85 : vector<32x1xf32>
    %87 = vector.broadcast %86 : vector<32x1xf32> to vector<32x128xf32>
    %88 = arith.mulf %83, %87 : vector<32x128xf32>
    %cst_33 = arith.constant 0.000000e+00 : f32
    %89 = vector.broadcast %cst_33 : f32 to vector<32x128xf32>
    %90 = arith.maximumf %88, %89 : vector<32x128xf32>
    %c96 = arith.constant 96 : index
    %c0_34 = arith.constant 0 : index
    %91 = vector.load %arg2[%c96, %c0_34] : memref<128x96xf32, #tpu.memory_space<vmem>>, vector<32x32xf32>
    %cst_35 = arith.constant dense<0.000000e+00> : vector<32x128xf32>
    %92 = tpu.matmul %91, %90, %cst_35 {dimension_numbers = #tpu.dot_dimension_numbers<[1], [0], [0], [1], [0, 0, 1, 1], [], []>} : vector<32x32xf32>, vector<32x128xf32>, vector<32x128xf32> -> vector<32x128xf32>
    %c0_36 = arith.constant 0 : index
    %c4 = arith.constant 4 : index
    %93 = vector.load %arg3[%c0_36, %c4] : memref<32x5xf32, #tpu.memory_space<vmem>>, vector<32x1xf32>
    %94 = vector.broadcast %93 : vector<32x1xf32> to vector<32x128xf32>
    %95 = arith.addf %92, %94 : vector<32x128xf32>
    %96 = arith.negf %95 : vector<32x128xf32>
    %97 = math.exp %96 : vector<32x128xf32>
    %cst_37 = arith.constant 1.000000e+00 : f32
    %98 = vector.broadcast %cst_37 : f32 to vector<32x128xf32>
    %99 = arith.addf %98, %97 : vector<32x128xf32>
    %100 = arith.divf %98, %99 : vector<32x128xf32>
    %101 = arith.mulf %100, %90 : vector<32x128xf32>
    %cst_38 = arith.constant 1.000000e+00 : f32
    %102 = vector.broadcast %cst_38 : f32 to vector<32x128xf32>
    %103 = arith.subf %102, %100 : vector<32x128xf32>
    %104 = arith.mulf %103, %34 : vector<32x128xf32>
    %105 = arith.addf %101, %104 : vector<32x128xf32>
    %c0_39 = arith.constant 0 : index
    %c0_40 = arith.constant 0 : index
    %c0_41 = arith.constant 0 : index
    %106 = vector.load %arg4[%c0_39, %c0_40, %c0_41] : memref<1x32x128xf32, #tpu.memory_space<vmem>>, vector<1x32x128xf32>
    %107 = vector.shape_cast %106 : vector<1x32x128xf32> to vector<32x128xf32>
    %108 = vector.shape_cast %105 : vector<32x128xf32> to vector<1x32x128xf32>
    tpu.vector_store %arg4[%c0_39, %c0_40, %c0_41], %108 {strides = array<i32>} : memref<1x32x128xf32, #tpu.memory_space<vmem>>, vector<1x32x128xf32>,
    return
  }
  func.func @transform_0(%arg0: i32) -> (i32, i32, i32) {
    %c0_i32 = arith.constant 0 : i32
    %c0_i32_0 = arith.constant 0 : i32
    %c0_i32_1 = arith.constant 0 : i32
    return %arg0, %c0_i32, %c0_i32_0 : i32, i32, i32
  }
  func.func @transform_1(%arg0: i32) -> (i32, i32) {
    %c0_i32 = arith.constant 0 : i32
    %c0_i32_0 = arith.constant 0 : i32
    %c0_i32_1 = arith.constant 0 : i32
    return %c0_i32, %c0_i32_0 : i32, i32
  }
  func.func @transform_2(%arg0: i32) -> (i32, i32) {
    %c0_i32 = arith.constant 0 : i32
    %c0_i32_0 = arith.constant 0 : i32
    %c0_i32_1 = arith.constant 0 : i32
    return %c0_i32, %c0_i32_0 : i32, i32
  }
  func.func @transform_3(%arg0: i32) -> (i32, i32, i32) {
    %c0_i32 = arith.constant 0 : i32
    %c0_i32_0 = arith.constant 0 : i32
    %c0_i32_1 = arith.constant 0 : i32
    return %arg0, %c0_i32, %c0_i32_0 : i32, i32, i32
  }
}

</mosaic_0001>

<llo_original>
// kernel: tpu_custom_call.1
$region0: #{tpu_custom_call.1}
  #allocation0 [shape = 'u32[]', space=smem, size = 0x4, offset = 0x4, fixed_abs, tag = 'smem constant byte address 0x4 - core index']
  #allocation1 [shape = 'u32[72,128]{1,0:T(1,128)}', space=vmem, size = 0x9000, scoped, tag = 'internal scratch']
  %s0 = inlined_call_operand.vmem [shape: f32[1,32,128], index: 0, kind: input, shape index: {}]
  %s1 = inlined_call_operand.vmem [shape: f32[128,96], index: 1, kind: input, shape index: {}]
  %s2 = inlined_call_operand.vmem [shape: f32[32,5], index: 2, kind: input, shape index: {}]
  %s3 = inlined_call_operand.hbm [shape: f32[1,32,128], index: 3, kind: output, shape index: {}]
  %s4 = sld [smem:[#allocation0]]
  $region22: #{tpu_custom_call.1} parent=0
    _
  %s6 = ssub.s32 1, %s4
  %s7 = scalar_select 0, %s6, %s4
  $region1: #{tpu_custom_call.1} parent=0
    #allocation2 [shape = 'u8[16384]{0}', space=vmem, size = 0x4000, scoped, tag = 'output window, operand 0, single buffered']
    #allocation3 [shape = 's32[1]{0}', space=sflag, size = 0x4, scoped, tag = 'scoped memory for tpu_custom_call.1']
    %8 = vsyncpa [#allocation3], 0
    // Predicated region
    $region2: #{tpu_custom_call.1} parent=1 // pred_check
      _
    $region3: #{tpu_custom_call.1} parent=1 // pred_check_branch
      %10 = sbr.rel (0) target = $region5
    $region4: #{tpu_custom_call.1} parent=1 // pred_region
      _
    $region5: #{tpu_custom_call.1} parent=1 // pred_fallthru
      _
    // Predicated region
    $region6: #{tpu_custom_call.1} parent=1 // pred_check
      _
    $region7: #{tpu_custom_call.1} parent=1 // pred_check_branch
      %12 = sbr.rel (0) target = $region9
    $region8: #{tpu_custom_call.1} parent=1 // pred_region
      _
    $region9: #{tpu_custom_call.1} parent=1 // pred_fallthru
      _
    // Predicated region
    $region10: #{tpu_custom_call.1} parent=1 // pred_check
      _
    $region11: #{tpu_custom_call.1} parent=1 // pred_check_branch
      %14 = sbr.rel (0) target = $region13
    $region12: #{tpu_custom_call.1} parent=1 // pred_region
      _
    $region13: #{tpu_custom_call.1} parent=1 // pred_fallthru
      _
    %v15 = vld [vmem:[%s0] sm:$0xff]
    %v16 = vld [vmem:[%s0 + $0x8] sm:$0xff]
    %v17 = vld [vmem:[%s0 + $0x10] sm:$0xff]
    %v18 = vld [vmem:[%s0 + $0x18] sm:$0xff]
    %v19 = vlaneseq
    %v20 = vand.u32 %v19, 127
    %vm21 = vcmp.eq.s32.totalorder %v20, 0
    %vm22 = vcmp.eq.s32.totalorder %v20, 127
    %v23 = vld [vmem:[%s1] sm:$0xff]
    %v24 = vld [vmem:[%s1 + $0x8] sm:$0xff]
    %v25 = vld [vmem:[%s1 + $0x10] sm:$0xff]
    %v26 = vld [vmem:[%s1 + $0x18] sm:$0xff]
    %v27 = vld [vmem:[%s1 + $0x20] sm:$0xff]
    %v28 = vld [vmem:[%s1 + $0x28] sm:$0xff]
    %v29 = vld [vmem:[%s1 + $0x30] sm:$0xff]
    %v30 = vld [vmem:[%s1 + $0x38] sm:$0xff]
    %31 = vrot.lane.b32.xlu0 %v15, 1
    %v32 = vpop.permute.xlu0 %31
    %33 = vrot.lane.b32.xlu0 %v16, 1
    %v34 = vpop.permute.xlu0 %33
    %35 = vrot.lane.b32.xlu0 %v17, 1
    %v36 = vpop.permute.xlu0 %35
    %37 = vrot.lane.b32.xlu0 %v18, 1
    %v38 = vpop.permute.xlu0 %37
    %v39 = vsel %vm21, 0.0, %v32
    %v40 = vsel %vm21, 0.0, %v34
    %v41 = vsel %vm21, 0.0, %v36
    %v42 = vsel %vm21, 0.0, %v38
    %43 = vrot.lane.b32.xlu0 %v15, 127
    %v44 = vpop.permute.xlu0 %43
    %45 = vrot.lane.b32.xlu0 %v16, 127
    %v46 = vpop.permute.xlu0 %45
    %47 = vrot.lane.b32.xlu0 %v17, 127
    %v48 = vpop.permute.xlu0 %47
    %49 = vrot.lane.b32.xlu0 %v18, 127
    %v50 = vpop.permute.xlu0 %49
    %v51 = vsel %vm22, 0.0, %v44
    %v52 = vsel %vm22, 0.0, %v46
    %v53 = vsel %vm22, 0.0, %v48
    %v54 = vsel %vm22, 0.0, %v50
    %vm55 = vcmask 785408
    %v57 = vsel %vm55, %v23, 0
    %v60 = vsel %vm55, %v24, 0
    %v63 = vsel %vm55, %v25, 0
    %v66 = vsel %vm55, %v26, 0
    %v69 = vsel %vm55, %v27, 0
    %v72 = vsel %vm55, %v28, 0
    %v75 = vsel %vm55, %v29, 0
    %v78 = vsel %vm55, %v30, 0
    %80 = vmatpush.msra.mxu0 0.0
    %81 = vmatpush.msra.mxu0 0.0
    %82 = vmatpush.msra.mxu0 0.0
    %83 = vmatpush.msra.mxu0 0.0
    %84 = vmatpush.msra.mxu0 %v54
    %85 = vmatpush.msra.mxu0 %v53
    %86 = vmatpush.msra.mxu0 %v52
    %87 = vmatpush.msra.mxu0 %v51
    %88 = vmatpush.msra.mxu0 %v18
    %89 = vmatpush.msra.mxu0 %v17
    %90 = vmatpush.msra.mxu0 %v16
    %91 = vmatpush.msra.mxu0 %v15
    %92 = vmatpush.msra.mxu0 %v42
    %93 = vmatpush.msra.mxu0 %v41
    %94 = vmatpush.msra.mxu0 %v40
    %95 = vmatpush.msra.mxu0 %v39
    %96 = vmatmul.f32.gmra.mxu0 %v57
    %v97 = vpop.f32.mrf.mxu0
    %v98 = vadd.f32 0.0, %v97
    %99 = vmatmul.f32.gmra.mxu0 %v60
    %v100 = vpop.f32.mrf.mxu0
    %v101 = vadd.f32 0.0, %v100
    %102 = vmatmul.f32.gmra.mxu0 %v63
    %v103 = vpop.f32.mrf.mxu0
    %v104 = vadd.f32 0.0, %v103
    %105 = vmatmul.f32.gmra.mxu0 %v66
    %v106 = vpop.f32.mrf.mxu0
    %v107 = vadd.f32 0.0, %v106
    %108 = vmatmul.f32.gmra.mxu0 %v69
    %v109 = vpop.f32.mrf.mxu0
    %v110 = vadd.f32 0.0, %v109
    %111 = vmatmul.f32.gmra.mxu0 %v72
    %v112 = vpop.f32.mrf.mxu0
    %v113 = vadd.f32 0.0, %v112
    %114 = vmatmul.f32.gmra.mxu0 %v75
    %v115 = vpop.f32.mrf.mxu0
    %v116 = vadd.f32 0.0, %v115
    %117 = vmatmul.f32.gmra.mxu0 %v78
    %v118 = vpop.f32.mrf.mxu0
    %v119 = vadd.f32 0.0, %v118
    %120 = vdwg.mxu0
    %v121 = vld [vmem:[%s2] sm:$0xff]
    %v122 = vld [vmem:[%s2 + $0x8] sm:$0xff]
    %v123 = vld [vmem:[%s2 + $0x10] sm:$0xff]
    %v124 = vld [vmem:[%s2 + $0x18] sm:$0xff]
    %126 = vset.pattern.permute.xlu0 0
    %127 = vperm.xlu0 %126, %v121
    %v128 = vpop.permute.xlu0 %127
    %131 = vset.pattern.permute.xlu0 0
    %132 = vperm.xlu0 %131, %v122
    %v133 = vpop.permute.xlu0 %132
    %136 = vset.pattern.permute.xlu0 0
    %137 = vperm.xlu0 %136, %v123
    %v138 = vpop.permute.xlu0 %137
    %141 = vset.pattern.permute.xlu0 0
    %142 = vperm.xlu0 %141, %v124
    %v143 = vpop.permute.xlu0 %142
    %v145 = vadd.f32 %v98, %v128
    %v146 = vadd.f32 %v101, %v133
    %v147 = vadd.f32 %v104, %v138
    %v148 = vadd.f32 %v107, %v143
    %149 = vset.pattern.permute.xlu0 1
    %150 = vperm.xlu0 %149, %v121
    %v151 = vpop.permute.xlu0 %150
    %153 = vset.pattern.permute.xlu0 1
    %154 = vperm.xlu0 %153, %v122
    %v155 = vpop.permute.xlu0 %154
    %157 = vset.pattern.permute.xlu0 1
    %158 = vperm.xlu0 %157, %v123
    %v159 = vpop.permute.xlu0 %158
    %161 = vset.pattern.permute.xlu0 1
    %162 = vperm.xlu0 %161, %v124
    %v163 = vpop.permute.xlu0 %162
    %v165 = vadd.f32 %v110, %v151
    %v166 = vadd.f32 %v113, %v155
    %v167 = vadd.f32 %v116, %v159
    %v168 = vadd.f32 %v119, %v163
    %v169 = vxor.u32 %v165, 2147483648
    %v170 = vxor.u32 %v166, 2147483648
    %v171 = vxor.u32 %v167, 2147483648
    %v172 = vxor.u32 %v168, 2147483648
    %v173 = vmul.f32 %v169, 1.442695
    %v174 = vpow.pop %v173
    %v175 = vmul.f32 %v170, 1.442695
    %v176 = vpow.pop %v175
    %v177 = vmul.f32 %v171, 1.442695
    %v178 = vpow.pop %v177
    %v179 = vmul.f32 %v172, 1.442695
    %v180 = vpow.pop %v179
    %v181 = vadd.f32 %v174, 1.0
    %v182 = vadd.f32 %v176, 1.0
    %v183 = vadd.f32 %v178, 1.0
    %v184 = vadd.f32 %v180, 1.0
    %v185 = vrcp.pop %v181
    %v186 = vmul.f32 %v181, %v185
    %v187 = vsub.f32 1.0, %v186
    %v188 = vmul.f32 %v185, %v187
    %v189 = vadd.f32 %v185, %v188
    %vm190 = vweird.f32 %v181
    %vm191 = vweird.f32 %v185
    %vm192 = vmor %vm190, %vm191
    %v193 = vsel %vm192, %v185, %v189
    %v194 = vand.u32 2147483647, %v181
    %vm195 = vcmp.eq.f32.partialorder %v194, 8.507059e+37
    %v196 = vand.u32 %v181, 2147483648
    %v197 = vor.u32 1.1754944e-38, %v196
    %v198 = vsel %vm195, %v197, %v193
    %v199 = vmul.f32 1.0, %v198
    %v200 = vrcp.pop %v182
    %v201 = vmul.f32 %v182, %v200
    %v202 = vsub.f32 1.0, %v201
    %v203 = vmul.f32 %v200, %v202
    %v204 = vadd.f32 %v200, %v203
    %vm205 = vweird.f32 %v182
    %vm206 = vweird.f32 %v200
    %vm207 = vmor %vm205, %vm206
    %v208 = vsel %vm207, %v200, %v204
    %v209 = vand.u32 2147483647, %v182
    %vm210 = vcmp.eq.f32.partialorder %v209, 8.507059e+37
    %v211 = vand.u32 %v182, 2147483648
    %v212 = vor.u32 1.1754944e-38, %v211
    %v213 = vsel %vm210, %v212, %v208
    %v214 = vmul.f32 1.0, %v213
    %v215 = vrcp.pop %v183
    %v216 = vmul.f32 %v183, %v215
    %v217 = vsub.f32 1.0, %v216
    %v218 = vmul.f32 %v215, %v217
    %v219 = vadd.f32 %v215, %v218
    %vm220 = vweird.f32 %v183
    %vm221 = vweird.f32 %v215
    %vm222 = vmor %vm220, %vm221
    %v223 = vsel %vm222, %v215, %v219
    %v224 = vand.u32 2147483647, %v183
    %vm225 = vcmp.eq.f32.partialorder %v224, 8.507059e+37
    %v226 = vand.u32 %v183, 2147483648
    %v227 = vor.u32 1.1754944e-38, %v226
    %v228 = vsel %vm225, %v227, %v223
    %v229 = vmul.f32 1.0, %v228
    %v230 = vrcp.pop %v184
    %v231 = vmul.f32 %v184, %v230
    %v232 = vsub.f32 1.0, %v231
    %v233 = vmul.f32 %v230, %v232
    %v234 = vadd.f32 %v230, %v233
    %vm235 = vweird.f32 %v184
    %vm236 = vweird.f32 %v230
    %vm237 = vmor %vm235, %vm236
    %v238 = vsel %vm237, %v230, %v234
    %v239 = vand.u32 2147483647, %v184
    %vm240 = vcmp.eq.f32.partialorder %v239, 8.507059e+37
    %v241 = vand.u32 %v184, 2147483648
    %v242 = vor.u32 1.1754944e-38, %v241
    %v243 = vsel %vm240, %v242, %v238
    %v244 = vmul.f32 1.0, %v243
    %v245 = vmul.f32 %v199, %v15
    %v246 = vmul.f32 %v214, %v16
    %v247 = vmul.f32 %v229, %v17
    %v248 = vmul.f32 %v244, %v18
    %249 = vset.pattern.permute.xlu0 2
    %250 = vperm.xlu0 %249, %v121
    %v251 = vpop.permute.xlu0 %250
    %253 = vset.pattern.permute.xlu0 2
    %254 = vperm.xlu0 %253, %v122
    %v255 = vpop.permute.xlu0 %254
    %257 = vset.pattern.permute.xlu0 2
    %258 = vperm.xlu0 %257, %v123
    %v259 = vpop.permute.xlu0 %258
    %261 = vset.pattern.permute.xlu0 2
    %262 = vperm.xlu0 %261, %v124
    %v263 = vpop.permute.xlu0 %262
    %v265 = vadd.f32 %v245, %v251
    %v266 = vadd.f32 %v246, %v255
    %v267 = vadd.f32 %v247, %v259
    %v268 = vadd.f32 %v248, %v263
    %v269 = vmax.f32 %v265, 0.0
    %v270 = vmax.f32 %v266, 0.0
    %v271 = vmax.f32 %v267, 0.0
    %v272 = vmax.f32 %v268, 0.0
    %273 = vadd.xlane.f32.xlu0 %v145
    %v274 = vpop.xlane.xlu0 %273
    %275 = vadd.xlane.f32.xlu0 %v146
    %v276 = vpop.xlane.xlu0 %275
    %277 = vadd.xlane.f32.xlu0 %v147
    %v278 = vpop.xlane.xlu0 %277
    %279 = vadd.xlane.f32.xlu0 %v148
    %v280 = vpop.xlane.xlu0 %279
    %v281 = vmul.f32 %v274, 0.0078125
    %v282 = vmul.f32 %v276, 0.0078125
    %v283 = vmul.f32 %v278, 0.0078125
    %v284 = vmul.f32 %v280, 0.0078125
    %v285 = vmul.f32 %v145, %v145
    %v286 = vmul.f32 %v146, %v146
    %v287 = vmul.f32 %v147, %v147
    %v288 = vmul.f32 %v148, %v148
    %289 = vadd.xlane.f32.xlu0 %v285
    %v290 = vpop.xlane.xlu0 %289
    %291 = vadd.xlane.f32.xlu0 %v286
    %v292 = vpop.xlane.xlu0 %291
    %293 = vadd.xlane.f32.xlu0 %v287
    %v294 = vpop.xlane.xlu0 %293
    %295 = vadd.xlane.f32.xlu0 %v288
    %v296 = vpop.xlane.xlu0 %295
    %v297 = vmul.f32 %v290, 0.0078125
    %v298 = vmul.f32 %v292, 0.0078125
    %v299 = vmul.f32 %v294, 0.0078125
    %v300 = vmul.f32 %v296, 0.0078125
    %v301 = vmul.f32 %v281, %v281
    %v302 = vmul.f32 %v282, %v282
    %v303 = vmul.f32 %v283, %v283
    %v304 = vmul.f32 %v284, %v284
    %v305 = vsub.f32 %v297, %v301
    %v306 = vsub.f32 %v298, %v302
    %v307 = vsub.f32 %v299, %v303
    %v308 = vsub.f32 %v300, %v304
    %v309 = vmax.f32 %v305, 0.0
    %v310 = vmax.f32 %v306, 0.0
    %v311 = vmax.f32 %v307, 0.0
    %v312 = vmax.f32 %v308, 0.0
    %v313 = vsub.f32 %v145, %v281
    %v314 = vsub.f32 %v146, %v282
    %v315 = vsub.f32 %v147, %v283
    %v316 = vsub.f32 %v148, %v284
    %v317 = vadd.f32 %v309, 1e-05
    %v318 = vadd.f32 %v310, 1e-05
    %v319 = vadd.f32 %v311, 1e-05
    %v320 = vadd.f32 %v312, 1e-05
    %v321 = vrsqrt.pop %v317
    %v322 = vmul.f32 %v321, %v317
    %v323 = vmul.f32 %v322, %v321
    %v324 = vmul.f32 0.5, %v323
    %v325 = vsub.f32 1.5, %v324
    %v326 = vmul.f32 %v321, %v325
    %vm327 = vweird.f32 %v317
    %vm328 = vweird.f32 %v321
    %vm329 = vmor %vm327, %vm328
    %v330 = vsel %vm329, %v321, %v326
    %v331 = vrsqrt.pop %v318
    %v332 = vmul.f32 %v331, %v318
    %v333 = vmul.f32 %v332, %v331
    %v334 = vmul.f32 0.5, %v333
    %v335 = vsub.f32 1.5, %v334
    %v336 = vmul.f32 %v331, %v335
    %vm337 = vweird.f32 %v318
    %vm338 = vweird.f32 %v331
    %vm339 = vmor %vm337, %vm338
    %v340 = vsel %vm339, %v331, %v336
    %v341 = vrsqrt.pop %v319
    %v342 = vmul.f32 %v341, %v319
    %v343 = vmul.f32 %v342, %v341
    %v344 = vmul.f32 0.5, %v343
    %v345 = vsub.f32 1.5, %v344
    %v346 = vmul.f32 %v341, %v345
    %vm347 = vweird.f32 %v319
    %vm348 = vweird.f32 %v341
    %vm349 = vmor %vm347, %vm348
    %v350 = vsel %vm349, %v341, %v346
    %v351 = vrsqrt.pop %v320
    %v352 = vmul.f32 %v351, %v320
    %v353 = vmul.f32 %v352, %v351
    %v354 = vmul.f32 0.5, %v353
    %v355 = vsub.f32 1.5, %v354
    %v356 = vmul.f32 %v351, %v355
    %vm357 = vweird.f32 %v320
    %vm358 = vweird.f32 %v351
    %vm359 = vmor %vm357, %vm358
    %v360 = vsel %vm359, %v351, %v356
    %v361 = vmul.f32 %v313, %v330
    %v362 = vmul.f32 %v314, %v340
    %v363 = vmul.f32 %v315, %v350
    %v364 = vmul.f32 %v316, %v360
    %v365 = vmax.f32 %v361, 0.0
    %v366 = vmax.f32 %v362, 0.0
    %v367 = vmax.f32 %v363, 0.0
    %v368 = vmax.f32 %v364, 0.0
    %v369 = vld [vmem:[%s1 + $0x40] sm:$0xff]
    %v370 = vld [vmem:[%s1 + $0x48] sm:$0xff]
    %v371 = vld [vmem:[%s1 + $0x50] sm:$0xff]
    %v372 = vld [vmem:[%s1 + $0x58] sm:$0xff]
    %373 = vrot.lane.b32.xlu0 %v365, 1
    %v374 = vpop.permute.xlu0 %373
    %375 = vrot.lane.b32.xlu0 %v366, 1
    %v376 = vpop.permute.xlu0 %375
    %377 = vrot.lane.b32.xlu0 %v367, 1
    %v378 = vpop.permute.xlu0 %377
    %379 = vrot.lane.b32.xlu0 %v368, 1
    %v380 = vpop.permute.xlu0 %379
    %v381 = vsel %vm21, 0.0, %v374
    %v382 = vsel %vm21, 0.0, %v376
    %v383 = vsel %vm21, 0.0, %v378
    %v384 = vsel %vm21, 0.0, %v380
    %385 = vrot.lane.b32.xlu0 %v365, 127
    %v386 = vpop.permute.xlu0 %385
    %387 = vrot.lane.b32.xlu0 %v366, 127
    %v388 = vpop.permute.xlu0 %387
    %389 = vrot.lane.b32.xlu0 %v367, 127
    %v390 = vpop.permute.xlu0 %389
    %391 = vrot.lane.b32.xlu0 %v368, 127
    %v392 = vpop.permute.xlu0 %391
    %v393 = vsel %vm22, 0.0, %v386
    %v394 = vsel %vm22, 0.0, %v388
    %v395 = vsel %vm22, 0.0, %v390
    %v396 = vsel %vm22, 0.0, %v392
    %397 = vset.pattern.permute.xlu0 3
    %398 = vperm.xlu0 %397, %v121
    %v399 = vpop.permute.xlu0 %398
    %401 = vset.pattern.permute.xlu0 3
    %402 = vperm.xlu0 %401, %v122
    %v403 = vpop.permute.xlu0 %402
    %405 = vset.pattern.permute.xlu0 3
    %406 = vperm.xlu0 %405, %v123
    %v407 = vpop.permute.xlu0 %406
    %409 = vset.pattern.permute.xlu0 3
    %410 = vperm.xlu0 %409, %v124
    %v411 = vpop.permute.xlu0 %410
    %v414 = vsel %vm55, %v369, 0
    %v417 = vsel %vm55, %v370, 0
    %v420 = vsel %vm55, %v371, 0
    %v423 = vsel %vm55, %v372, 0
    %425 = vmatpush.msra.mxu0 0.0
    %426 = vmatpush.msra.mxu0 0.0
    %427 = vmatpush.msra.mxu0 0.0
    %428 = vmatpush.msra.mxu0 0.0
    %429 = vmatpush.msra.mxu0 %v396
    %430 = vmatpush.msra.mxu0 %v395
    %431 = vmatpush.msra.mxu0 %v394
    %432 = vmatpush.msra.mxu0 %v393
    %433 = vmatpush.msra.mxu0 %v368
    %434 = vmatpush.msra.mxu0 %v367
    %435 = vmatpush.msra.mxu0 %v366
    %436 = vmatpush.msra.mxu0 %v365
    %437 = vmatpush.msra.mxu0 %v384
    %438 = vmatpush.msra.mxu0 %v383
    %439 = vmatpush.msra.mxu0 %v382
    %440 = vmatpush.msra.mxu0 %v381
    %441 = vmatmul.f32.gmra.mxu0 %v414
    %v442 = vpop.f32.mrf.mxu0
    %v443 = vadd.f32 %v399, %v442
    %444 = vmatmul.f32.gmra.mxu0 %v417
    %v445 = vpop.f32.mrf.mxu0
    %v446 = vadd.f32 %v403, %v445
    %447 = vmatmul.f32.gmra.mxu0 %v420
    %v448 = vpop.f32.mrf.mxu0
    %v449 = vadd.f32 %v407, %v448
    %450 = vmatmul.f32.gmra.mxu0 %v423
    %v451 = vpop.f32.mrf.mxu0
    %v452 = vadd.f32 %v411, %v451
    %453 = vdwg.mxu0
    %454 = vadd.xlane.f32.xlu0 %v443
    %v455 = vpop.xlane.xlu0 %454
    %456 = vadd.xlane.f32.xlu0 %v446
    %v457 = vpop.xlane.xlu0 %456
    %458 = vadd.xlane.f32.xlu0 %v449
    %v459 = vpop.xlane.xlu0 %458
    %460 = vadd.xlane.f32.xlu0 %v452
    %v461 = vpop.xlane.xlu0 %460
    %v462 = vmul.f32 %v455, 0.0078125
    %v463 = vmul.f32 %v457, 0.0078125
    %v464 = vmul.f32 %v459, 0.0078125
    %v465 = vmul.f32 %v461, 0.0078125
    %v466 = vmul.f32 %v443, %v443
    %v467 = vmul.f32 %v446, %v446
    %v468 = vmul.f32 %v449, %v449
    %v469 = vmul.f32 %v452, %v452
    %470 = vadd.xlane.f32.xlu0 %v466
    %v471 = vpop.xlane.xlu0 %470
    %472 = vadd.xlane.f32.xlu0 %v467
    %v473 = vpop.xlane.xlu0 %472
    %474 = vadd.xlane.f32.xlu0 %v468
    %v475 = vpop.xlane.xlu0 %474
    %476 = vadd.xlane.f32.xlu0 %v469
    %v477 = vpop.xlane.xlu0 %476
    %v478 = vmul.f32 %v471, 0.0078125
    %v479 = vmul.f32 %v473, 0.0078125
    %v480 = vmul.f32 %v475, 0.0078125
    %v481 = vmul.f32 %v477, 0.0078125
    %v482 = vmul.f32 %v462, %v462
    %v483 = vmul.f32 %v463, %v463
    %v484 = vmul.f32 %v464, %v464
    %v485 = vmul.f32 %v465, %v465
    %v486 = vsub.f32 %v478, %v482
    %v487 = vsub.f32 %v479, %v483
    %v488 = vsub.f32 %v480, %v484
    %v489 = vsub.f32 %v481, %v485
    %v490 = vmax.f32 %v486, 0.0
    %v491 = vmax.f32 %v487, 0.0
    %v492 = vmax.f32 %v488, 0.0
    %v493 = vmax.f32 %v489, 0.0
    %v494 = vsub.f32 %v443, %v462
    %v495 = vsub.f32 %v446, %v463
    %v496 = vsub.f32 %v449, %v464
    %v497 = vsub.f32 %v452, %v465
    %v498 = vadd.f32 %v490, 1e-05
    %v499 = vadd.f32 %v491, 1e-05
    %v500 = vadd.f32 %v492, 1e-05
    %v501 = vadd.f32 %v493, 1e-05
    %v502 = vrsqrt.pop %v498
    %v503 = vmul.f32 %v502, %v498
    %v504 = vmul.f32 %v503, %v502
    %v505 = vmul.f32 0.5, %v504
    %v506 = vsub.f32 1.5, %v505
    %v507 = vmul.f32 %v502, %v506
    %vm508 = vweird.f32 %v498
    %vm509 = vweird.f32 %v502
    %vm510 = vmor %vm508, %vm509
    %v511 = vsel %vm510, %v502, %v507
    %v512 = vrsqrt.pop %v499
    %v513 = vmul.f32 %v512, %v499
    %v514 = vmul.f32 %v513, %v512
    %v515 = vmul.f32 0.5, %v514
    %v516 = vsub.f32 1.5, %v515
    %v517 = vmul.f32 %v512, %v516
    %vm518 = vweird.f32 %v499
    %vm519 = vweird.f32 %v512
    %vm520 = vmor %vm518, %vm519
    %v521 = vsel %vm520, %v512, %v517
    %v522 = vrsqrt.pop %v500
    %v523 = vmul.f32 %v522, %v500
    %v524 = vmul.f32 %v523, %v522
    %v525 = vmul.f32 0.5, %v524
    %v526 = vsub.f32 1.5, %v525
    %v527 = vmul.f32 %v522, %v526
    %vm528 = vweird.f32 %v500
    %vm529 = vweird.f32 %v522
    %vm530 = vmor %vm528, %vm529
    %v531 = vsel %vm530, %v522, %v527
    %v532 = vrsqrt.pop %v501
    %v533 = vmul.f32 %v532, %v501
    %v534 = vmul.f32 %v533, %v532
    %v535 = vmul.f32 0.5, %v534
    %v536 = vsub.f32 1.5, %v535
    %v537 = vmul.f32 %v532, %v536
    %vm538 = vweird.f32 %v501
    %vm539 = vweird.f32 %v532
    %vm540 = vmor %vm538, %vm539
    %v541 = vsel %vm540, %v532, %v537
    %v542 = vmul.f32 %v494, %v511
    %v543 = vmul.f32 %v495, %v521
    %v544 = vmul.f32 %v496, %v531
    %v545 = vmul.f32 %v497, %v541
    %v546 = vmax.f32 %v542, 0.0
    %v547 = vmax.f32 %v543, 0.0
    %v548 = vmax.f32 %v544, 0.0
    %v549 = vmax.f32 %v545, 0.0
    %v550 = vld [vmem:[%s1 + $0x60] sm:$0xff]
    %v551 = vld [vmem:[%s1 + $0x68] sm:$0xff]
    %v552 = vld [vmem:[%s1 + $0x70] sm:$0xff]
    %v553 = vld [vmem:[%s1 + $0x78] sm:$0xff]
    %554 = vset.pattern.permute.xlu0 4
    %555 = vperm.xlu0 %554, %v121
    %v556 = vpop.permute.xlu0 %555
    %558 = vset.pattern.permute.xlu0 4
    %559 = vperm.xlu0 %558, %v122
    %v560 = vpop.permute.xlu0 %559
    %562 = vset.pattern.permute.xlu0 4
    %563 = vperm.xlu0 %562, %v123
    %v564 = vpop.permute.xlu0 %563
    %566 = vset.pattern.permute.xlu0 4
    %567 = vperm.xlu0 %566, %v124
    %v568 = vpop.permute.xlu0 %567
    %vm570 = vcmask 261120
    %v572 = vsel %vm570, %v550, 0
    %v575 = vsel %vm570, %v551, 0
    %v578 = vsel %vm570, %v552, 0
    %v581 = vsel %vm570, %v553, 0
    %583 = vmatpush.msra.mxu0 0.0
    %584 = vmatpush.msra.mxu0 0.0
    %585 = vmatpush.msra.mxu0 0.0
    %586 = vmatpush.msra.mxu0 0.0
    %587 = vmatpush.msra.mxu0 0.0
    %588 = vmatpush.msra.mxu0 0.0
    %589 = vmatpush.msra.mxu0 0.0
    %590 = vmatpush.msra.mxu0 0.0
    %591 = vmatpush.msra.mxu0 0.0
    %592 = vmatpush.msra.mxu0 0.0
    %593 = vmatpush.msra.mxu0 0.0
    %594 = vmatpush.msra.mxu0 0.0
    %595 = vmatpush.msra.mxu0 %v549
    %596 = vmatpush.msra.mxu0 %v548
    %597 = vmatpush.msra.mxu0 %v547
    %598 = vmatpush.msra.mxu0 %v546
    %599 = vmatmul.f32.gmra.mxu0 %v572
    %v600 = vpop.f32.mrf.mxu0
    %v601 = vadd.f32 %v556, %v600
    %602 = vmatmul.f32.gmra.mxu0 %v575
    %v603 = vpop.f32.mrf.mxu0
    %v604 = vadd.f32 %v560, %v603
    %605 = vmatmul.f32.gmra.mxu0 %v578
    %v606 = vpop.f32.mrf.mxu0
    %v607 = vadd.f32 %v564, %v606
    %608 = vmatmul.f32.gmra.mxu0 %v581
    %v609 = vpop.f32.mrf.mxu0
    %v610 = vadd.f32 %v568, %v609
    %611 = vdwg.mxu0
    %v612 = vxor.u32 %v601, 2147483648
    %v613 = vxor.u32 %v604, 2147483648
    %v614 = vxor.u32 %v607, 2147483648
    %v615 = vxor.u32 %v610, 2147483648
    %v616 = vmul.f32 %v612, 1.442695
    %v617 = vpow.pop %v616
    %v618 = vmul.f32 %v613, 1.442695
    %v619 = vpow.pop %v618
    %v620 = vmul.f32 %v614, 1.442695
    %v621 = vpow.pop %v620
    %v622 = vmul.f32 %v615, 1.442695
    %v623 = vpow.pop %v622
    %v624 = vadd.f32 %v617, 1.0
    %v625 = vadd.f32 %v619, 1.0
    %v626 = vadd.f32 %v621, 1.0
    %v627 = vadd.f32 %v623, 1.0
    %v628 = vrcp.pop %v624
    %v629 = vmul.f32 %v624, %v628
    %v630 = vsub.f32 1.0, %v629
    %v631 = vmul.f32 %v628, %v630
    %v632 = vadd.f32 %v628, %v631
    %vm633 = vweird.f32 %v624
    %vm634 = vweird.f32 %v628
    %vm635 = vmor %vm633, %vm634
    %v636 = vsel %vm635, %v628, %v632
    %v637 = vand.u32 2147483647, %v624
    %vm638 = vcmp.eq.f32.partialorder %v637, 8.507059e+37
    %v639 = vand.u32 %v624, 2147483648
    %v640 = vor.u32 1.1754944e-38, %v639
    %v641 = vsel %vm638, %v640, %v636
    %v642 = vmul.f32 1.0, %v641
    %v643 = vrcp.pop %v625
    %v644 = vmul.f32 %v625, %v643
    %v645 = vsub.f32 1.0, %v644
    %v646 = vmul.f32 %v643, %v645
    %v647 = vadd.f32 %v643, %v646
    %vm648 = vweird.f32 %v625
    %vm649 = vweird.f32 %v643
    %vm650 = vmor %vm648, %vm649
    %v651 = vsel %vm650, %v643, %v647
    %v652 = vand.u32 2147483647, %v625
    %vm653 = vcmp.eq.f32.partialorder %v652, 8.507059e+37
    %v654 = vand.u32 %v625, 2147483648
    %v655 = vor.u32 1.1754944e-38, %v654
    %v656 = vsel %vm653, %v655, %v651
    %v657 = vmul.f32 1.0, %v656
    %v658 = vrcp.pop %v626
    %v659 = vmul.f32 %v626, %v658
    %v660 = vsub.f32 1.0, %v659
    %v661 = vmul.f32 %v658, %v660
    %v662 = vadd.f32 %v658, %v661
    %vm663 = vweird.f32 %v626
    %vm664 = vweird.f32 %v658
    %vm665 = vmor %vm663, %vm664
    %v666 = vsel %vm665, %v658, %v662
    %v667 = vand.u32 2147483647, %v626
    %vm668 = vcmp.eq.f32.partialorder %v667, 8.507059e+37
    %v669 = vand.u32 %v626, 2147483648
    %v670 = vor.u32 1.1754944e-38, %v669
    %v671 = vsel %vm668, %v670, %v666
    %v672 = vmul.f32 1.0, %v671
    %v673 = vrcp.pop %v627
    %v674 = vmul.f32 %v627, %v673
    %v675 = vsub.f32 1.0, %v674
    %v676 = vmul.f32 %v673, %v675
    %v677 = vadd.f32 %v673, %v676
    %vm678 = vweird.f32 %v627
    %vm679 = vweird.f32 %v673
    %vm680 = vmor %vm678, %vm679
    %v681 = vsel %vm680, %v673, %v677
    %v682 = vand.u32 2147483647, %v627
    %vm683 = vcmp.eq.f32.partialorder %v682, 8.507059e+37
    %v684 = vand.u32 %v627, 2147483648
    %v685 = vor.u32 1.1754944e-38, %v684
    %v686 = vsel %vm683, %v685, %v681
    %v687 = vmul.f32 1.0, %v686
    %v688 = vmul.f32 %v642, %v546
    %v689 = vmul.f32 %v657, %v547
    %v690 = vmul.f32 %v672, %v548
    %v691 = vmul.f32 %v687, %v549
    %v692 = vsub.f32 1.0, %v642
    %v693 = vsub.f32 1.0, %v657
    %v694 = vsub.f32 1.0, %v672
    %v695 = vsub.f32 1.0, %v687
    %v696 = vmul.f32 %v692, %v269
    %v697 = vmul.f32 %v693, %v270
    %v698 = vmul.f32 %v694, %v271
    %v699 = vmul.f32 %v695, %v272
    %v700 = vadd.f32 %v688, %v696
    %v701 = vadd.f32 %v689, %v697
    %v702 = vadd.f32 %v690, %v698
    %v703 = vadd.f32 %v691, %v699
    %704 = vst [vmem:[#allocation2] sm:$0xff] %v700
    %705 = vst [vmem:[#allocation2 + $0x8] sm:$0xff] %v701
    %706 = vst [vmem:[#allocation2 + $0x10] sm:$0xff] %v702
    %707 = vst [vmem:[#allocation2 + $0x18] sm:$0xff] %v703
    // Predicated region
    $region14: #{tpu_custom_call.1} parent=1 // pred_check
      _
    $region15: #{tpu_custom_call.1} parent=1 // pred_check_branch
      %709 = sbr.rel (0) target = $region17
    $region16: #{tpu_custom_call.1} parent=1 // pred_region
      %711 = vsyncadd [#allocation3], 0
      %s712 = sshll.u32 [#allocation2], 4
      %s713 = int_to_ptr.vmem [resolvable:$true] %s712
      %s714 = sshll.u32 %s3, 4
      %s715 = int_to_ptr.hbm [resolvable:$true] %s714
      %720 = dma.vmem_to_hbm [thread:$0]  %s713, 512, %s715, [#allocation3], 128, 128, 8
    $region17: #{tpu_custom_call.1} parent=1 // pred_fallthru
      _
    // Predicated region
    $region18: #{tpu_custom_call.1} parent=1 // pred_check
      _
    $region19: #{tpu_custom_call.1} parent=1 // pred_check_branch
      %722 = sbr.rel (0) target = $region21
    $region20: #{tpu_custom_call.1} parent=1 // pred_region
      %724 = dma.done [#allocation3], 512
    $region21: #{tpu_custom_call.1} parent=1 // pred_fallthru
      _
    %725 = vsyncpa [#allocation3], 1

</llo_original>
